<compile_context>
chip_gen: v5e
topology: v5e:2x2
jax: 0.10.0
libtpu: 0.0.40
codegen_flags: <defaults>
</compile_context>

<pallas_src>
import functools

import jax
import jax.numpy as jnp
from jax.experimental import pallas as pl
from jax.experimental.pallas import tpu as pltpu


def _vmem_capacity_bytes() -> int:
    """Per-core VMEM capacity; conservative 64 MiB (v7x per-TC) if unknown."""
    try:
        cap = getattr(pltpu.get_tpu_info(), "vmem_capacity_bytes", None)
        if cap:
            return int(cap)
    except Exception:
        pass
    return 64 * 1024 * 1024


def _choose_tiles(BH, S, D, itemsize, budget):
    """Pick (head_tile TH, seq_tile TS) for (BH, S, D) q/k arrays.

    Per-grid-step VMEM model (bytes), E = TH*TS*D:
      streamed q/k/qo/ko, double-buffered      : 8 * E * itemsize
      f32 tables (cos, sin), double-buffered   : 16 * TS * D
      f32 per-head temps (upcast/roll/products): ~24 * TS * D
    """
    # Seq tile: full S if a single head's row fits, else the largest multiple
    # of 8 that does.  Also capped (~512K elems, i.e. ~2 MiB f32 per row tile):
    # beyond the ~1 MiB knee extra tile size buys no bandwidth, and a smaller
    # TS lets the head tile grow instead.
    per_row = D * (8 * itemsize + 40)          # streamed + tables + temps per seq row
    ts_from_budget = max(8, (budget // per_row) // 8 * 8)
    ts_from_cap = max(8, ((512 * 1024) // D) // 8 * 8)
    ts = min(S, ts_from_budget, ts_from_cap)

    # Head tile: as many heads as the remaining budget allows (no divisibility
    # requirement; ragged last block is masked by Pallas).
    fixed = 40 * ts * D                         # tables + f32 temps
    th = max(1, (budget - fixed) // max(1, 8 * ts * D * itemsize))
    th = min(th, BH)

    # Prefer an even total number of grid steps so v7x's two TensorCores get
    # balanced work; bounded to at most halving the head tile, which keeps
    # tiles near the roofline knee (negligible cost on single-TC v5e/v6e).
    n_s = pl.cdiv(S, ts)
    n_h = pl.cdiv(BH, th)
    if BH > 1 and (n_s * n_h) % 2 == 1:
        for n_try in range(n_h + 1, 2 * n_h + 1):
            th_try = pl.cdiv(BH, n_try)
            if (n_s * pl.cdiv(BH, th_try)) % 2 == 0:
                th = th_try
                break
    return th, ts


def _rope_kernel(cos_ref, sin_ref, q_ref, k_ref, qo_ref, ko_ref):
    # cos/sin: (TS, D) float32; sin already carries the rotate_half sign:
    #   rotate_half(x) * sin  ==  roll(x, D/2, lane axis) * sign_folded_sin
    # (a roll by exactly D/2 over the length-D axis is direction-agnostic).
    # q/k blocks: (TH, TS, D).  Heads are rotated one at a time so the math
    # stays 2-D and neither the f32 upcasts nor the tables are ever
    # materialized at the full (TH, TS, D) block size.
    half = q_ref.shape[-1] // 2
    n_heads = q_ref.shape[0]
    cos = cos_ref[...]
    sin = sin_ref[...]

    def per_head(h, carry):
        q = q_ref[h, :, :].astype(jnp.float32)
        k = k_ref[h, :, :].astype(jnp.float32)
        qo_ref[h, :, :] = (
            q * cos + pltpu.roll(q, shift=half, axis=1) * sin
        ).astype(qo_ref.dtype)
        ko_ref[h, :, :] = (
            k * cos + pltpu.roll(k, shift=half, axis=1) * sin
        ).astype(ko_ref.dtype)
        return carry

    if n_heads <= 8:
        # Small head tiles: fully static unroll (best LLO scheduler visibility).
        for h in range(n_heads):
            per_head(h, 0)
    else:
        jax.lax.fori_loop(0, n_heads, per_head, 0)


@functools.partial(jax.jit, static_argnames=("base", "inplace"))
def rope_pallas(q, k, base=10000.0, inplace=False):
    B, H, S, D = q.shape
    assert k.shape == (B, H, S, D) and k.dtype == q.dtype
    assert D % 2 == 0

    # --- glue: f32 cos / sign-folded sin tables (matches the PyTorch module) ---
    inv_freq = 1.0 / (base ** (jnp.arange(0, D, 2, dtype=jnp.float32) / D))  # (D/2,)
    pos = jnp.arange(S, dtype=jnp.float32)                                    # (S,)
    theta = jnp.outer(pos, inv_freq)                                          # (S, D/2)
    cos_h, sin_h = jnp.cos(theta), jnp.sin(theta)
    cos = jnp.concatenate([cos_h, cos_h], axis=-1)                            # (S, D)
    sin_signed = jnp.concatenate([-sin_h, sin_h], axis=-1)                    # (S, D)
    # Tables stay float32: the kernel rotates in f32 and only the final store
    # rounds to the I/O dtype (bf16 inputs keep full-precision tables).

    BH = B * H
    qf = q.reshape(BH, S, D)
    kf = k.reshape(BH, S, D)
    itemsize = jnp.dtype(q.dtype).itemsize

    vmem_cap = _vmem_capacity_bytes()
    vmem_limit = min(vmem_cap * 3 // 4, 112 * 1024 * 1024)  # headroom under physical VMEM
    budget = max(vmem_limit - 8 * 1024 * 1024, 8 * 1024 * 1024)
    TH, TS = _choose_tiles(BH, S, D, itemsize, budget)
    n_h = pl.cdiv(BH, TH)
    n_s = pl.cdiv(S, TS)

    if n_s == 1:
        # Short/medium sequences: tables fully resident, 1-D parallel grid over
        # head tiles.
        grid = (n_h,)
        dim_sem = ("parallel",)
        tab_map = lambda h: (0, 0)
        qk_map = lambda h: (h, 0, 0)
    else:
        # Long sequences: tile the sequence too.  Seq is the *outer* grid axis
        # so the (TS, D) tables are only re-fetched once per seq tile.
        grid = (n_s, n_h)
        dim_sem = ("parallel", "parallel")
        tab_map = lambda s, h: (s, 0)
        qk_map = lambda s, h: (h, s, 0)

    # Advisory cost: pure memory streaming (read + write q and k, plus tables).
    bytes_accessed = 4 * BH * S * D * itemsize + 8 * S * D
    cost = pl.CostEstimate(flops=8 * BH * S * D, transcendentals=0,
                           bytes_accessed=bytes_accessed)

    extra = {}
    if inplace:
        # Callers that donate q/k get an in-place rotation (no extra HBM
        # footprint).  Off by default: without donation XLA inserts defensive
        # copies of q/k in front of the kernel.
        extra["input_output_aliases"] = {2: 0, 3: 1}

    # TODO(synk): for head_dim < 128 (e.g. D=64) a lane-dense layout
    # ((BH, S, D) -> (BH, S*D/128, 128) with a grouped two-roll+select rotate)
    # would avoid masked partial stores; left out until the grouped-roll
    # direction is validated on hardware.

    qo, ko = pl.pallas_call(
        _rope_kernel,
        out_shape=[
            jax.ShapeDtypeStruct((BH, S, D), q.dtype),
            jax.ShapeDtypeStruct((BH, S, D), k.dtype),
        ],
        grid=grid,
        in_specs=[
            pl.BlockSpec((TS, D), tab_map),        # cos   (f32)
            pl.BlockSpec((TS, D), tab_map),        # sin   (f32, sign-folded)
            pl.BlockSpec((TH, TS, D), qk_map),     # q block (TH heads x TS rows)
            pl.BlockSpec((TH, TS, D), qk_map),     # k block
        ],
        out_specs=[
            pl.BlockSpec((TH, TS, D), qk_map),
            pl.BlockSpec((TH, TS, D), qk_map),
        ],
        compiler_params=pltpu.CompilerParams(
            dimension_semantics=dim_sem,
            vmem_limit_bytes=vmem_limit,
        ),
        cost_estimate=cost,
        **extra,
    )(cos, sin_signed, qf, kf)

    return qo.reshape(B, H, S, D), ko.reshape(B, H, S, D)


def _rope_reference(q, k, base=10000.0):
    """Pure-JAX reference mirroring the PyTorch forward."""
    B, H, S, D = q.shape
    inv_freq = 1.0 / (base ** (jnp.arange(0, D, 2, dtype=jnp.float32) / D))
    pos = jnp.arange(S, dtype=jnp.float32)
    theta = jnp.outer(pos, inv_freq)
    theta = jnp.concatenate([theta, theta], axis=-1)
    cos = jnp.cos(theta)[None, None, :, :]
    sin = jnp.sin(theta)[None, None, :, :]

    def rotate_half(x):
        x1 = x[..., : x.shape[-1] // 2]
        x2 = x[..., x.shape[-1] // 2:]
        return jnp.concatenate([-x2, x1], axis=-1)

    return q * cos + rotate_half(q) * sin, k * cos + rotate_half(k) * sin


if __name__ == "__main__":
    # Small but realistic: head_dim 128 keeps the lane axis dense (typical
    # llama head_dim); seq stays short to keep the test tiny.
    B, H, S, D = 2, 4, 8, 128  # batch, heads, seq, head_dim
    key = jax.random.PRNGKey(0)
    kq, kk = jax.random.split(key)
    q = jax.random.normal(kq, (B, H, S, D), dtype=jnp.float32)
    k = jax.random.normal(kk, (B, H, S, D), dtype=jnp.float32)

    q_rot, k_rot = rope_pallas(q, k)
    jax.block_until_ready((q_rot, k_rot))

    q_ref, k_ref = _rope_reference(q, k)
    assert jnp.allclose(q_rot, q_ref, atol=1e-5, rtol=1e-5)
    assert jnp.allclose(k_rot, k_ref, atol=1e-5, rtol=1e-5)

    # bf16 I/O path: tables and math stay f32 inside the kernel, only the
    # final store rounds to bf16.
    qb, kb = q.astype(jnp.bfloat16), k.astype(jnp.bfloat16)
    qb_rot, kb_rot = rope_pallas(qb, kb)
    jax.block_until_ready((qb_rot, kb_rot))
    qb_ref, kb_ref = _rope_reference(qb.astype(jnp.float32), kb.astype(jnp.float32))
    assert jnp.allclose(qb_rot.astype(jnp.float32), qb_ref, atol=2e-2, rtol=2e-2)
    assert jnp.allclose(kb_rot.astype(jnp.float32), kb_ref, atol=2e-2, rtol=2e-2)

    print("KERNEL_OK")
</pallas_src>

<mosaic_0001>
module attributes {stable_mosaic.version = 11 : i64} {
  func.func @_rope_kernel(%arg0: i32, %arg1: memref<8x128xf32, #tpu.memory_space<vmem>>, %arg2: memref<8x128xf32, #tpu.memory_space<vmem>>, %arg3: memref<4x8x128xf32, #tpu.memory_space<vmem>>, %arg4: memref<4x8x128xf32, #tpu.memory_space<vmem>>, %arg5: memref<4x8x128xf32, #tpu.memory_space<vmem>>, %arg6: memref<4x8x128xf32, #tpu.memory_space<vmem>>) attributes {dimension_semantics = [#tpu.dimension_semantics<parallel>], iteration_bounds = array<i64: 2>, scalar_prefetch = 0 : i64, scratch_operands = 0 : i64, tpu.core_type = #tpu.core_type<tc>, window_params = [{pipeline_mode = #tpu.pipeline_mode<synchronous>, transform_indices = @transform_0, window_bounds = array<i64: 8, 128>}, {pipeline_mode = #tpu.pipeline_mode<synchronous>, transform_indices = @transform_1, window_bounds = array<i64: 8, 128>}, {transform_indices = @transform_2, window_bounds = array<i64: 4, 8, 128>}, {transform_indices = @transform_3, window_bounds = array<i64: 4, 8, 128>}, {transform_indices = @transform_4, window_bounds = array<i64: 4, 8, 128>}, {transform_indices = @transform_5, window_bounds = array<i64: 4, 8, 128>}]} {
    %c0 = arith.constant 0 : index
    %c0_0 = arith.constant 0 : index
    %0 = vector.load %arg1[%c0, %c0_0] : memref<8x128xf32, #tpu.memory_space<vmem>>, vector<8x128xf32>
    %c0_1 = arith.constant 0 : index
    %c0_2 = arith.constant 0 : index
    %1 = vector.load %arg2[%c0_1, %c0_2] : memref<8x128xf32, #tpu.memory_space<vmem>>, vector<8x128xf32>
    %c0_3 = arith.constant 0 : index
    %c0_4 = arith.constant 0 : index
    %c0_5 = arith.constant 0 : index
    %2 = vector.load %arg3[%c0_3, %c0_4, %c0_5] : memref<4x8x128xf32, #tpu.memory_space<vmem>>, vector<1x8x128xf32>
    %3 = vector.shape_cast %2 : vector<1x8x128xf32> to vector<8x128xf32>
    %c0_6 = arith.constant 0 : index
    %c0_7 = arith.constant 0 : index
    %c0_8 = arith.constant 0 : index
    %4 = vector.load %arg4[%c0_6, %c0_7, %c0_8] : memref<4x8x128xf32, #tpu.memory_space<vmem>>, vector<1x8x128xf32>
    %5 = vector.shape_cast %4 : vector<1x8x128xf32> to vector<8x128xf32>
    %6 = arith.mulf %3, %0 : vector<8x128xf32>
    %c64_i32 = arith.constant 64 : i32
    %7 = tpu.dynamic_rotate %3 by %c64_i32 dim 1 : vector<8x128xf32>, i32 -> vector<8x128xf32>
    %8 = arith.mulf %7, %1 : vector<8x128xf32>
    %9 = arith.addf %6, %8 : vector<8x128xf32>
    %c0_9 = arith.constant 0 : index
    %c0_10 = arith.constant 0 : index
    %c0_11 = arith.constant 0 : index
    %10 = vector.load %arg5[%c0_9, %c0_10, %c0_11] : memref<4x8x128xf32, #tpu.memory_space<vmem>>, vector<1x8x128xf32>
    %11 = vector.shape_cast %10 : vector<1x8x128xf32> to vector<8x128xf32>
    %12 = vector.shape_cast %9 : vector<8x128xf32> to vector<1x8x128xf32>
    tpu.vector_store %arg5[%c0_9, %c0_10, %c0_11], %12 {strides = array<i32>} : memref<4x8x128xf32, #tpu.memory_space<vmem>>, vector<1x8x128xf32>,
    %13 = arith.mulf %5, %0 : vector<8x128xf32>
    %c64_i32_12 = arith.constant 64 : i32
    %14 = tpu.dynamic_rotate %5 by %c64_i32_12 dim 1 : vector<8x128xf32>, i32 -> vector<8x128xf32>
    %15 = arith.mulf %14, %1 : vector<8x128xf32>
    %16 = arith.addf %13, %15 : vector<8x128xf32>
    %c0_13 = arith.constant 0 : index
    %c0_14 = arith.constant 0 : index
    %c0_15 = arith.constant 0 : index
    %17 = vector.load %arg6[%c0_13, %c0_14, %c0_15] : memref<4x8x128xf32, #tpu.memory_space<vmem>>, vector<1x8x128xf32>
    %18 = vector.shape_cast %17 : vector<1x8x128xf32> to vector<8x128xf32>
    %19 = vector.shape_cast %16 : vector<8x128xf32> to vector<1x8x128xf32>
    tpu.vector_store %arg6[%c0_13, %c0_14, %c0_15], %19 {strides = array<i32>} : memref<4x8x128xf32, #tpu.memory_space<vmem>>, vector<1x8x128xf32>,
    %c1 = arith.constant 1 : index
    %c0_16 = arith.constant 0 : index
    %c0_17 = arith.constant 0 : index
    %20 = vector.load %arg3[%c1, %c0_16, %c0_17] : memref<4x8x128xf32, #tpu.memory_space<vmem>>, vector<1x8x128xf32>
    %21 = vector.shape_cast %20 : vector<1x8x128xf32> to vector<8x128xf32>
    %c1_18 = arith.constant 1 : index
    %c0_19 = arith.constant 0 : index
    %c0_20 = arith.constant 0 : index
    %22 = vector.load %arg4[%c1_18, %c0_19, %c0_20] : memref<4x8x128xf32, #tpu.memory_space<vmem>>, vector<1x8x128xf32>
    %23 = vector.shape_cast %22 : vector<1x8x128xf32> to vector<8x128xf32>
    %24 = arith.mulf %21, %0 : vector<8x128xf32>
    %c64_i32_21 = arith.constant 64 : i32
    %25 = tpu.dynamic_rotate %21 by %c64_i32_21 dim 1 : vector<8x128xf32>, i32 -> vector<8x128xf32>
    %26 = arith.mulf %25, %1 : vector<8x128xf32>
    %27 = arith.addf %24, %26 : vector<8x128xf32>
    %c1_22 = arith.constant 1 : index
    %c0_23 = arith.constant 0 : index
    %c0_24 = arith.constant 0 : index
    %28 = vector.load %arg5[%c1_22, %c0_23, %c0_24] : memref<4x8x128xf32, #tpu.memory_space<vmem>>, vector<1x8x128xf32>
    %29 = vector.shape_cast %28 : vector<1x8x128xf32> to vector<8x128xf32>
    %30 = vector.shape_cast %27 : vector<8x128xf32> to vector<1x8x128xf32>
    tpu.vector_store %arg5[%c1_22, %c0_23, %c0_24], %30 {strides = array<i32>} : memref<4x8x128xf32, #tpu.memory_space<vmem>>, vector<1x8x128xf32>,
    %31 = arith.mulf %23, %0 : vector<8x128xf32>
    %c64_i32_25 = arith.constant 64 : i32
    %32 = tpu.dynamic_rotate %23 by %c64_i32_25 dim 1 : vector<8x128xf32>, i32 -> vector<8x128xf32>
    %33 = arith.mulf %32, %1 : vector<8x128xf32>
    %34 = arith.addf %31, %33 : vector<8x128xf32>
    %c1_26 = arith.constant 1 : index
    %c0_27 = arith.constant 0 : index
    %c0_28 = arith.constant 0 : index
    %35 = vector.load %arg6[%c1_26, %c0_27, %c0_28] : memref<4x8x128xf32, #tpu.memory_space<vmem>>, vector<1x8x128xf32>
    %36 = vector.shape_cast %35 : vector<1x8x128xf32> to vector<8x128xf32>
    %37 = vector.shape_cast %34 : vector<8x128xf32> to vector<1x8x128xf32>
    tpu.vector_store %arg6[%c1_26, %c0_27, %c0_28], %37 {strides = array<i32>} : memref<4x8x128xf32, #tpu.memory_space<vmem>>, vector<1x8x128xf32>,
    %c2 = arith.constant 2 : index
    %c0_29 = arith.constant 0 : index
    %c0_30 = arith.constant 0 : index
    %38 = vector.load %arg3[%c2, %c0_29, %c0_30] : memref<4x8x128xf32, #tpu.memory_space<vmem>>, vector<1x8x128xf32>
    %39 = vector.shape_cast %38 : vector<1x8x128xf32> to vector<8x128xf32>
    %c2_31 = arith.constant 2 : index
    %c0_32 = arith.constant 0 : index
    %c0_33 = arith.constant 0 : index
    %40 = vector.load %arg4[%c2_31, %c0_32, %c0_33] : memref<4x8x128xf32, #tpu.memory_space<vmem>>, vector<1x8x128xf32>
    %41 = vector.shape_cast %40 : vector<1x8x128xf32> to vector<8x128xf32>
    %42 = arith.mulf %39, %0 : vector<8x128xf32>
    %c64_i32_34 = arith.constant 64 : i32
    %43 = tpu.dynamic_rotate %39 by %c64_i32_34 dim 1 : vector<8x128xf32>, i32 -> vector<8x128xf32>
    %44 = arith.mulf %43, %1 : vector<8x128xf32>
    %45 = arith.addf %42, %44 : vector<8x128xf32>
    %c2_35 = arith.constant 2 : index
    %c0_36 = arith.constant 0 : index
    %c0_37 = arith.constant 0 : index
    %46 = vector.load %arg5[%c2_35, %c0_36, %c0_37] : memref<4x8x128xf32, #tpu.memory_space<vmem>>, vector<1x8x128xf32>
    %47 = vector.shape_cast %46 : vector<1x8x128xf32> to vector<8x128xf32>
    %48 = vector.shape_cast %45 : vector<8x128xf32> to vector<1x8x128xf32>
    tpu.vector_store %arg5[%c2_35, %c0_36, %c0_37], %48 {strides = array<i32>} : memref<4x8x128xf32, #tpu.memory_space<vmem>>, vector<1x8x128xf32>,
    %49 = arith.mulf %41, %0 : vector<8x128xf32>
    %c64_i32_38 = arith.constant 64 : i32
    %50 = tpu.dynamic_rotate %41 by %c64_i32_38 dim 1 : vector<8x128xf32>, i32 -> vector<8x128xf32>
    %51 = arith.mulf %50, %1 : vector<8x128xf32>
    %52 = arith.addf %49, %51 : vector<8x128xf32>
    %c2_39 = arith.constant 2 : index
    %c0_40 = arith.constant 0 : index
    %c0_41 = arith.constant 0 : index
    %53 = vector.load %arg6[%c2_39, %c0_40, %c0_41] : memref<4x8x128xf32, #tpu.memory_space<vmem>>, vector<1x8x128xf32>
    %54 = vector.shape_cast %53 : vector<1x8x128xf32> to vector<8x128xf32>
    %55 = vector.shape_cast %52 : vector<8x128xf32> to vector<1x8x128xf32>
    tpu.vector_store %arg6[%c2_39, %c0_40, %c0_41], %55 {strides = array<i32>} : memref<4x8x128xf32, #tpu.memory_space<vmem>>, vector<1x8x128xf32>,
    %c3 = arith.constant 3 : index
    %c0_42 = arith.constant 0 : index
    %c0_43 = arith.constant 0 : index
    %56 = vector.load %arg3[%c3, %c0_42, %c0_43] : memref<4x8x128xf32, #tpu.memory_space<vmem>>, vector<1x8x128xf32>
    %57 = vector.shape_cast %56 : vector<1x8x128xf32> to vector<8x128xf32>
    %c3_44 = arith.constant 3 : index
    %c0_45 = arith.constant 0 : index
    %c0_46 = arith.constant 0 : index
    %58 = vector.load %arg4[%c3_44, %c0_45, %c0_46] : memref<4x8x128xf32, #tpu.memory_space<vmem>>, vector<1x8x128xf32>
    %59 = vector.shape_cast %58 : vector<1x8x128xf32> to vector<8x128xf32>
    %60 = arith.mulf %57, %0 : vector<8x128xf32>
    %c64_i32_47 = arith.constant 64 : i32
    %61 = tpu.dynamic_rotate %57 by %c64_i32_47 dim 1 : vector<8x128xf32>, i32 -> vector<8x128xf32>
    %62 = arith.mulf %61, %1 : vector<8x128xf32>
    %63 = arith.addf %60, %62 : vector<8x128xf32>
    %c3_48 = arith.constant 3 : index
    %c0_49 = arith.constant 0 : index
    %c0_50 = arith.constant 0 : index
    %64 = vector.load %arg5[%c3_48, %c0_49, %c0_50] : memref<4x8x128xf32, #tpu.memory_space<vmem>>, vector<1x8x128xf32>
    %65 = vector.shape_cast %64 : vector<1x8x128xf32> to vector<8x128xf32>
    %66 = vector.shape_cast %63 : vector<8x128xf32> to vector<1x8x128xf32>
    tpu.vector_store %arg5[%c3_48, %c0_49, %c0_50], %66 {strides = array<i32>} : memref<4x8x128xf32, #tpu.memory_space<vmem>>, vector<1x8x128xf32>,
    %67 = arith.mulf %59, %0 : vector<8x128xf32>
    %c64_i32_51 = arith.constant 64 : i32
    %68 = tpu.dynamic_rotate %59 by %c64_i32_51 dim 1 : vector<8x128xf32>, i32 -> vector<8x128xf32>
    %69 = arith.mulf %68, %1 : vector<8x128xf32>
    %70 = arith.addf %67, %69 : vector<8x128xf32>
    %c3_52 = arith.constant 3 : index
    %c0_53 = arith.constant 0 : index
    %c0_54 = arith.constant 0 : index
    %71 = vector.load %arg6[%c3_52, %c0_53, %c0_54] : memref<4x8x128xf32, #tpu.memory_space<vmem>>, vector<1x8x128xf32>
    %72 = vector.shape_cast %71 : vector<1x8x128xf32> to vector<8x128xf32>
    %73 = vector.shape_cast %70 : vector<8x128xf32> to vector<1x8x128xf32>
    tpu.vector_store %arg6[%c3_52, %c0_53, %c0_54], %73 {strides = array<i32>} : memref<4x8x128xf32, #tpu.memory_space<vmem>>, vector<1x8x128xf32>,
    return
  }
  func.func @transform_0(%arg0: i32) -> (i32, i32) {
    %c0_i32 = arith.constant 0 : i32
    %c0_i32_0 = arith.constant 0 : i32
    %c0_i32_1 = arith.constant 0 : i32
    return %c0_i32, %c0_i32_0 : i32, i32
  }
  func.func @transform_1(%arg0: i32) -> (i32, i32) {
    %c0_i32 = arith.constant 0 : i32
    %c0_i32_0 = arith.constant 0 : i32
    %c0_i32_1 = arith.constant 0 : i32
    return %c0_i32, %c0_i32_0 : i32, i32
  }
  func.func @transform_2(%arg0: i32) -> (i32, i32, i32) {
    %c0_i32 = arith.constant 0 : i32
    %c0_i32_0 = arith.constant 0 : i32
    %c0_i32_1 = arith.constant 0 : i32
    return %arg0, %c0_i32, %c0_i32_0 : i32, i32, i32
  }
  func.func @transform_3(%arg0: i32) -> (i32, i32, i32) {
    %c0_i32 = arith.constant 0 : i32
    %c0_i32_0 = arith.constant 0 : i32
    %c0_i32_1 = arith.constant 0 : i32
    return %arg0, %c0_i32, %c0_i32_0 : i32, i32, i32
  }
  func.func @transform_4(%arg0: i32) -> (i32, i32, i32) {
    %c0_i32 = arith.constant 0 : i32
    %c0_i32_0 = arith.constant 0 : i32
    %c0_i32_1 = arith.constant 0 : i32
    return %arg0, %c0_i32, %c0_i32_0 : i32, i32, i32
  }
  func.func @transform_5(%arg0: i32) -> (i32, i32, i32) {
    %c0_i32 = arith.constant 0 : i32
    %c0_i32_0 = arith.constant 0 : i32
    %c0_i32_1 = arith.constant 0 : i32
    return %arg0, %c0_i32, %c0_i32_0 : i32, i32, i32
  }
}

</mosaic_0001>

<llo_original>
// kernel: rope_pallas.1
$region0: #{rope_pallas.1}
  #allocation0 [shape = 'u32[]', space=smem, size = 0x4, offset = 0x4, fixed_abs, tag = 'smem constant byte address 0x4 - core index']
  #allocation1 [shape = 'u32[72,128]{1,0:T(1,128)}', space=vmem, size = 0x9000, scoped, tag = 'internal scratch']
  %s0 = inlined_call_operand.vmem [shape: f32[8,128], index: 0, kind: input, shape index: {}]
  %s1 = inlined_call_operand.vmem [shape: f32[8,128], index: 1, kind: input, shape index: {}]
  %s2 = inlined_call_operand.vmem [shape: f32[8,8,128], index: 2, kind: input, shape index: {}]
  %s3 = inlined_call_operand.hbm [shape: f32[8,8,128], index: 3, kind: input, shape index: {}]
  %s4 = inlined_call_operand.hbm [shape: f32[8,8,128], index: 4, kind: output, shape index: {0}]
  %s5 = inlined_call_operand.hbm [shape: f32[8,8,128], index: 5, kind: output, shape index: {1}]
  %6 = xla_tuple %s4, %s5
  %s7 = sld [smem:[#allocation0]]
  $region61: #{rope_pallas.1} parent=0
    _
  %s9 = ssub.s32 1, %s7
  %s10 = scalar_select 0, %s9, %s7
  $region1: #{rope_pallas.1} parent=0
    #allocation2 [shape = 'u8[32768]{0}', space=vmem, size = 0x8000, scoped, tag = 'input window, operand 3']
    #allocation3 [shape = 's32[2]{0}', space=sflag, size = 0x8, scoped, tag = 'scoped memory for rope_pallas.1']
    #allocation4 [shape = 's32[2]{0}', space=sflag, size = 0x8, scoped, tag = 'scoped memory for rope_pallas.1']
    #allocation5 [shape = 'u8[32768]{0}', space=vmem, size = 0x8000, scoped, tag = 'output window, operand 0']
    #allocation6 [shape = 'u8[32768]{0}', space=vmem, size = 0x8000, scoped, tag = 'output window, operand 1']
    #allocation7 [shape = 's32[2]{0}', space=sflag, size = 0x8, scoped, tag = 'scoped memory for rope_pallas.1']
    %11 = vsyncpa [#allocation3], 0
    %s12 = scalar_lea.sflag [#allocation3], 1
    %13 = vsyncpa %s12, 0
    %14 = vsyncpa [#allocation4], 0
    %s15 = scalar_lea.sflag [#allocation4], 1
    %16 = vsyncpa %s15, 0
    %17 = vsyncpa [#allocation7], 0
    %s18 = scalar_lea.sflag [#allocation7], 1
    %19 = vsyncpa %s18, 0
    loop: start=0, step=1, limit=4
    $region2: #{rope_pallas.1} parent=1 // loop_pre_header
      _
    $region3: #{rope_pallas.1} parent=1 // loop_header
      %s21 = sphi 0, %s25
      %p22 = scmp.ge.s32.totalorder %s21, 4
      %s29 = sphi 0, %s29
      %s31 = sphi 0, %s29
      %s32 = sphi 0, %s31
      %s46 = sphi 0, %s32
      %s50 = sphi 0, %s50
      %s52 = sphi 0, %s50
      %s53 = sphi 0, %s52
      %s67 = sphi 0, %s53
      %s73 = sphi 0, %s75
      %s76 = sphi 0, %s73
      %s77 = sphi 0, %s76
      %s93 = sphi 0, %s77
      %s99 = sphi 0, %s101
      %s102 = sphi 0, %s99
      %s103 = sphi 0, %s102
      %s119 = sphi 0, %s103
      %s125 = sphi 0, %s127
      %s128 = sphi 0, %s125
      %s129 = sphi 0, %s128
      %s145 = sphi 0, %s129
      %s151 = sphi 0, %s153
      %s154 = sphi 0, %s151
      %s155 = sphi 0, %s154
      %s171 = sphi 0, %s155
    $region4: #{rope_pallas.1} parent=1 // loop_header_branch
      %24 = sbr.rel (%p22) target = $region8
    $region5: #{rope_pallas.1} parent=1 // loop_body
      %s26 = ssub.s32 %s21, 1
      %s27 = ssub.s32 %s21, 2
      %s28 = sadd.s32 %s21, 1
      %s30 = sadd.s32 %s29, 1
      %p33 = scmp.eq.s32.totalorder %s21, 1
      %p34 = scmp.ne.s32.totalorder %s29, %s31
      %p35 = scmp.eq.s32.totalorder %s21, 0
      %p36 = por %p34, %p35
      %p37 = scmp.ne.s32.totalorder %s29, %s31
      %p38 = scmp.eq.s32.totalorder %s26, 1
      %p39 = por %p37, %p38
      %p40 = scmp.ne.s32.totalorder %s31, %s32
      %p41 = scmp.eq.s32.totalorder %s26, 0
      %p42 = por %p40, %p41
      %p43 = scmp.ne.s32.totalorder %s31, %s32
      %p44 = scmp.eq.s32.totalorder %s27, 1
      %p45 = por %p43, %p44
      %p47 = scmp.ne.s32.totalorder %s32, %s46
      %p48 = scmp.eq.s32.totalorder %s27, 0
      %p49 = por %p47, %p48
      %s51 = sadd.s32 %s50, 1
      %p54 = scmp.eq.s32.totalorder %s21, 1
      %p55 = scmp.ne.s32.totalorder %s50, %s52
      %p56 = scmp.eq.s32.totalorder %s21, 0
      %p57 = por %p55, %p56
      %p58 = scmp.ne.s32.totalorder %s50, %s52
      %p59 = scmp.eq.s32.totalorder %s26, 1
      %p60 = por %p58, %p59
      %p61 = scmp.ne.s32.totalorder %s52, %s53
      %p62 = scmp.eq.s32.totalorder %s26, 0
      %p63 = por %p61, %p62
      %p64 = scmp.ne.s32.totalorder %s52, %s53
      %p65 = scmp.eq.s32.totalorder %s27, 1
      %p66 = por %p64, %p65
      %p68 = scmp.ne.s32.totalorder %s53, %s67
      %p69 = scmp.eq.s32.totalorder %s27, 0
      %p70 = por %p68, %p69
      %s71 = ssub.s32 %s21, %s28
      %p72 = scmp.eq.s32.totalorder %s71, 0
      %s74 = sadd.s32 %s73, 1
      %s75 = scalar_select %p72, %s73, %s74
      %p78 = pneg %p72
      %p79 = scmp.eq.s32.totalorder %s21, 1
      %p80 = por %p78, %p79
      %p81 = scmp.ne.s32.totalorder %s73, %s76
      %p82 = scmp.eq.s32.totalorder %s21, 0
      %p83 = por %p81, %p82
      %p84 = scmp.ne.s32.totalorder %s73, %s76
      %p85 = scmp.eq.s32.totalorder %s26, 1
      %p86 = por %p84, %p85
      %p87 = scmp.ne.s32.totalorder %s76, %s77
      %p88 = scmp.eq.s32.totalorder %s26, 0
      %p89 = por %p87, %p88
      %p90 = scmp.ne.s32.totalorder %s76, %s77
      %p91 = scmp.eq.s32.totalorder %s27, 1
      %p92 = por %p90, %p91
      %p94 = scmp.ne.s32.totalorder %s77, %s93
      %p95 = scmp.eq.s32.totalorder %s27, 0
      %p96 = por %p94, %p95
      %s97 = ssub.s32 %s21, %s28
      %p98 = scmp.eq.s32.totalorder %s97, 0
      %s100 = sadd.s32 %s99, 1
      %s101 = scalar_select %p98, %s99, %s100
      %p104 = pneg %p98
      %p105 = scmp.eq.s32.totalorder %s21, 1
      %p106 = por %p104, %p105
      %p107 = scmp.ne.s32.totalorder %s99, %s102
      %p108 = scmp.eq.s32.totalorder %s21, 0
      %p109 = por %p107, %p108
      %p110 = scmp.ne.s32.totalorder %s99, %s102
      %p111 = scmp.eq.s32.totalorder %s26, 1
      %p112 = por %p110, %p111
      %p113 = scmp.ne.s32.totalorder %s102, %s103
      %p114 = scmp.eq.s32.totalorder %s26, 0
      %p115 = por %p113, %p114
      %p116 = scmp.ne.s32.totalorder %s102, %s103
      %p117 = scmp.eq.s32.totalorder %s27, 1
      %p118 = por %p116, %p117
      %p120 = scmp.ne.s32.totalorder %s103, %s119
      %p121 = scmp.eq.s32.totalorder %s27, 0
      %p122 = por %p120, %p121
      %s123 = ssub.s32 %s21, %s28
      %p124 = scmp.eq.s32.totalorder %s123, 0
      %s126 = sadd.s32 %s125, 1
      %s127 = scalar_select %p124, %s125, %s126
      %p130 = pneg %p124
      %p131 = scmp.eq.s32.totalorder %s21, 1
      %p132 = por %p130, %p131
      %p133 = scmp.ne.s32.totalorder %s125, %s128
      %p134 = scmp.eq.s32.totalorder %s21, 0
      %p135 = por %p133, %p134
      %p136 = scmp.ne.s32.totalorder %s125, %s128
      %p137 = scmp.eq.s32.totalorder %s26, 1
      %p138 = por %p136, %p137
      %p139 = scmp.ne.s32.totalorder %s128, %s129
      %p140 = scmp.eq.s32.totalorder %s26, 0
      %p141 = por %p139, %p140
      %p142 = scmp.ne.s32.totalorder %s128, %s129
      %p143 = scmp.eq.s32.totalorder %s27, 1
      %p144 = por %p142, %p143
      %p146 = scmp.ne.s32.totalorder %s129, %s145
      %p147 = scmp.eq.s32.totalorder %s27, 0
      %p148 = por %p146, %p147
      %s149 = ssub.s32 %s21, %s28
      %p150 = scmp.eq.s32.totalorder %s149, 0
      %s152 = sadd.s32 %s151, 1
      %s153 = scalar_select %p150, %s151, %s152
      %p156 = pneg %p150
      %p157 = scmp.eq.s32.totalorder %s21, 1
      %p158 = por %p156, %p157
      %p159 = scmp.ne.s32.totalorder %s151, %s154
      %p160 = scmp.eq.s32.totalorder %s21, 0
      %p161 = por %p159, %p160
      %p162 = scmp.ne.s32.totalorder %s151, %s154
      %p163 = scmp.eq.s32.totalorder %s26, 1
      %p164 = por %p162, %p163
      %p165 = scmp.ne.s32.totalorder %s154, %s155
      %p166 = scmp.eq.s32.totalorder %s26, 0
      %p167 = por %p165, %p166
      %p168 = scmp.ne.s32.totalorder %s154, %s155
      %p169 = scmp.eq.s32.totalorder %s27, 1
      %p170 = por %p168, %p169
      %p172 = scmp.ne.s32.totalorder %s155, %s171
      %p173 = scmp.eq.s32.totalorder %s27, 0
      %p174 = por %p172, %p173
      %p175 = scmp.le.s32.totalorder 1, %s21
      %p176 = scmp.lt.s32.totalorder %s21, 3
      %p177 = pnand %p175, %p176
      %p178 = pneg %p177
      // Predicated region
      $region9: #{rope_pallas.1} parent=5 // pred_check
        _
      $region10: #{rope_pallas.1} parent=5 // pred_check_branch
        %180 = sbr.rel (%p177) target = $region12
      $region11: #{rope_pallas.1} parent=5 // pred_region
        %s181 = ssub.s32 %s21, 1
        // Predicated region
        $region13: #{rope_pallas.1} parent=11 // pred_check
          %p182 = pneg %p42
        $region14: #{rope_pallas.1} parent=11 // pred_check_branch
          %184 = sbr.rel (%p182) target = $region16
        $region15: #{rope_pallas.1} parent=11 // pred_region
          _
        $region16: #{rope_pallas.1} parent=11 // pred_fallthru
          _
        // Predicated region
        $region17: #{rope_pallas.1} parent=11 // pred_check
          %p185 = pneg %p63
        $region18: #{rope_pallas.1} parent=11 // pred_check_branch
          %187 = sbr.rel (%p185) target = $region20
        $region19: #{rope_pallas.1} parent=11 // pred_region
          _
        $region20: #{rope_pallas.1} parent=11 // pred_fallthru
          _
      $region12: #{rope_pallas.1} parent=5 // pred_fallthru
        _
      %p188 = scmp.lt.s32.totalorder %s21, 2
      // Predicated region
      $region21: #{rope_pallas.1} parent=5 // pred_check
        %p189 = pneg %p188
      $region22: #{rope_pallas.1} parent=5 // pred_check_branch
        %191 = sbr.rel (%p189) target = $region24
      $region23: #{rope_pallas.1} parent=5 // pred_region
        // Predicated region
        $region25: #{rope_pallas.1} parent=23 // pred_check
          %p192 = pneg %p83
        $region26: #{rope_pallas.1} parent=23 // pred_check_branch
          %194 = sbr.rel (%p192) target = $region28
        $region27: #{rope_pallas.1} parent=23 // pred_region
          %s195 = smul.u32 4, %s21
          %p196 = scmp.lt.s32.totalorder %s195, 7
          %s197 = scalar_select %p196, %s195, 7
          %s198 = smul.addr %s197, 8
          %s199 = scalar_lea.vmem %s2, %s198
          %s200 = smul.u32 4, %s21
        $region28: #{rope_pallas.1} parent=23 // pred_fallthru
          _
        // Predicated region
        $region29: #{rope_pallas.1} parent=23 // pred_check
          %p201 = pneg %p109
        $region30: #{rope_pallas.1} parent=23 // pred_check_branch
          %203 = sbr.rel (%p201) target = $region32
        $region31: #{rope_pallas.1} parent=23 // pred_region
          %s204 = sand.u32 %s99, 1
          %s205 = scalar_lea.sflag [#allocation3], %s204
          %s206 = sand.u32 %s99, 1
          %s207 = smul.addr %s206, 32
          %s208 = scalar_lea.vmem [#allocation2], %s207
          %s209 = smul.u32 4, %s21
          %211 = vsyncadd %s205, 0
          %s212 = smul.addr %s209, 8
          %s213 = scalar_lea.hbm %s3, %s212
          %s214 = sshll.u32 %s213, 4
          %s215 = int_to_ptr.hbm [resolvable:$true] %s214
          %s216 = sshll.u32 %s208, 4
          %s217 = int_to_ptr.vmem [resolvable:$true] %s216
          %222 = dma.hbm_to_vmem [thread:$0]  %s215, 512, %s217, %s205, 128, 128, 8
        $region32: #{rope_pallas.1} parent=23 // pred_fallthru
          _
      $region24: #{rope_pallas.1} parent=5 // pred_fallthru
        _
      %p223 = scmp.le.s32.totalorder 1, %s21
      %p224 = scmp.lt.s32.totalorder %s21, 3
      %p225 = pnand %p223, %p224
      %p226 = pneg %p225
      // Predicated region
      $region33: #{rope_pallas.1} parent=5 // pred_check
        _
      $region34: #{rope_pallas.1} parent=5 // pred_check_branch
        %228 = sbr.rel (%p225) target = $region36
      $region35: #{rope_pallas.1} parent=5 // pred_region
        %s229 = ssub.s32 %s21, 1
        %s230 = sand.u32 %s102, 1
        %s231 = scalar_lea.sflag [#allocation3], %s230
        %s232 = sand.u32 %s102, 1
        %s233 = smul.addr %s232, 32
        %s234 = scalar_lea.vmem [#allocation2], %s233
        // Predicated region
        $region37: #{rope_pallas.1} parent=35 // pred_check
          %p235 = pneg %p115
        $region38: #{rope_pallas.1} parent=35 // pred_check_branch
          %237 = sbr.rel (%p235) target = $region40
        $region39: #{rope_pallas.1} parent=35 // pred_region
          %239 = dma.done %s231, 512
        $region40: #{rope_pallas.1} parent=35 // pred_fallthru
          _
        %p240 = pneg %p42
        %p241 = pneg %p39
        %p242 = pneg %p63
        %p243 = pneg %p60
        %s244 = smul.u32 4, %s26
        %p245 = scmp.lt.s32.totalorder %s244, 7
        %s246 = scalar_select %p245, %s244, 7
        %s247 = smul.addr %s246, 8
        %s248 = scalar_lea.vmem %s2, %s247
        %p249 = pneg %p89
        %p250 = pneg %p86
        %s251 = sand.u32 %s102, 1
        %s252 = scalar_lea.sflag [#allocation3], %s251
        %s253 = sand.u32 %s102, 1
        %s254 = smul.addr %s253, 32
        %s255 = scalar_lea.vmem [#allocation2], %s254
        %p256 = pneg %p115
        %p257 = pneg %p112
        %p258 = pneg %p141
        %p259 = pneg %p138
        %s260 = sand.u32 %s128, 1
        %s261 = scalar_lea.sflag [#allocation4], %s260
        %s262 = sand.u32 %s128, 1
        %s263 = smul.addr %s262, 32
        %s264 = scalar_lea.vmem [#allocation5], %s263
        %p265 = pneg %p167
        %p266 = pneg %p164
        %s267 = sand.u32 %s154, 1
        %s268 = scalar_lea.sflag [#allocation7], %s267
        %s269 = sand.u32 %s154, 1
        %s270 = smul.addr %s269, 32
        %s271 = scalar_lea.vmem [#allocation6], %s270
        %s272 = smul.u32 4, %s26
        %p273 = scmp.lt.s32.totalorder %s272, 7
        %s274 = scalar_select %p273, %s272, 7
        %s275 = smul.addr %s274, 8
        %s276 = scalar_lea.vmem %s2, %s275
        %s277 = smul.u32 4, %s26
        %s278 = smul.u32 4, %s26
        %s279 = smul.u32 4, %s26
        %s280 = smul.u32 4, %s26
        %v281 = vld [vmem:[%s0] sm:$0xff]
        %v282 = vld [vmem:[%s1] sm:$0xff]
        %v283 = vld [vmem:[%s276] sm:$0xff]
        %v284 = vld [vmem:[%s234] sm:$0xff]
        %v285 = vmul.f32 %v283, %v281
        %286 = vrot.lane.b32.xlu0 %v283, 64
        %v287 = vpop.permute.xlu0 %286
        %v288 = vmul.f32 %v287, %v282
        %v289 = vadd.f32 %v285, %v288
        %290 = vst [vmem:[%s264] sm:$0xff] %v289
        %v291 = vmul.f32 %v284, %v281
        %292 = vrot.lane.b32.xlu0 %v284, 64
        %v293 = vpop.permute.xlu0 %292
        %v294 = vmul.f32 %v293, %v282
        %v295 = vadd.f32 %v291, %v294
        %296 = vst [vmem:[%s271] sm:$0xff] %v295
        %s297 = scalar_lea.vmem %s276, 8
        %v298 = vld [vmem:[%s297] sm:$0xff]
        %s299 = scalar_lea.vmem %s234, 8 [#allocation2]
        %v300 = vld [vmem:[%s299] sm:$0xff]
        %v301 = vmul.f32 %v298, %v281
        %302 = vrot.lane.b32.xlu0 %v298, 64
        %v303 = vpop.permute.xlu0 %302
        %v304 = vmul.f32 %v303, %v282
        %v305 = vadd.f32 %v301, %v304
        %s306 = scalar_lea.vmem %s264, 8 [#allocation5]
        %307 = vst [vmem:[%s306] sm:$0xff] %v305
        %v308 = vmul.f32 %v300, %v281
        %309 = vrot.lane.b32.xlu0 %v300, 64
        %v310 = vpop.permute.xlu0 %309
        %v311 = vmul.f32 %v310, %v282
        %v312 = vadd.f32 %v308, %v311
        %s313 = scalar_lea.vmem %s271, 8 [#allocation6]
        %314 = vst [vmem:[%s313] sm:$0xff] %v312
        %s315 = scalar_lea.vmem %s276, 16
        %v316 = vld [vmem:[%s315] sm:$0xff]
        %s317 = scalar_lea.vmem %s234, 16 [#allocation2]
        %v318 = vld [vmem:[%s317] sm:$0xff]
        %v319 = vmul.f32 %v316, %v281
        %320 = vrot.lane.b32.xlu0 %v316, 64
        %v321 = vpop.permute.xlu0 %320
        %v322 = vmul.f32 %v321, %v282
        %v323 = vadd.f32 %v319, %v322
        %s324 = scalar_lea.vmem %s264, 16 [#allocation5]
        %325 = vst [vmem:[%s324] sm:$0xff] %v323
        %v326 = vmul.f32 %v318, %v281
        %327 = vrot.lane.b32.xlu0 %v318, 64
        %v328 = vpop.permute.xlu0 %327
        %v329 = vmul.f32 %v328, %v282
        %v330 = vadd.f32 %v326, %v329
        %s331 = scalar_lea.vmem %s271, 16 [#allocation6]
        %332 = vst [vmem:[%s331] sm:$0xff] %v330
        %s333 = scalar_lea.vmem %s276, 24
        %v334 = vld [vmem:[%s333] sm:$0xff]
        %s335 = scalar_lea.vmem %s234, 24 [#allocation2]
        %v336 = vld [vmem:[%s335] sm:$0xff]
        %v337 = vmul.f32 %v334, %v281
        %338 = vrot.lane.b32.xlu0 %v334, 64
        %v339 = vpop.permute.xlu0 %338
        %v340 = vmul.f32 %v339, %v282
        %v341 = vadd.f32 %v337, %v340
        %s342 = scalar_lea.vmem %s264, 24 [#allocation5]
        %343 = vst [vmem:[%s342] sm:$0xff] %v341
        %v344 = vmul.f32 %v336, %v281
        %345 = vrot.lane.b32.xlu0 %v336, 64
        %v346 = vpop.permute.xlu0 %345
        %v347 = vmul.f32 %v346, %v282
        %v348 = vadd.f32 %v344, %v347
        %s349 = scalar_lea.vmem %s271, 24 [#allocation6]
        %350 = vst [vmem:[%s349] sm:$0xff] %v348
        %s351 = sand.u32 %s128, 1
        %s352 = scalar_lea.sflag [#allocation4], %s351
        %s353 = sand.u32 %s128, 1
        %s354 = smul.addr %s353, 32
        %s355 = scalar_lea.vmem [#allocation5], %s354
        %s356 = sand.u32 %s154, 1
        %s357 = scalar_lea.sflag [#allocation7], %s356
        %s358 = sand.u32 %s154, 1
        %s359 = smul.addr %s358, 32
        %s360 = scalar_lea.vmem [#allocation6], %s359
        // Predicated region
        $region41: #{rope_pallas.1} parent=35 // pred_check
          %p361 = pneg %p138
        $region42: #{rope_pallas.1} parent=35 // pred_check_branch
          %363 = sbr.rel (%p361) target = $region44
        $region43: #{rope_pallas.1} parent=35 // pred_region
          %s364 = smul.u32 4, %s26
          %366 = vsyncadd %s352, 0
          %s367 = smul.addr %s364, 8
          %s368 = scalar_lea.hbm %s4, %s367
          %s369 = sshll.u32 %s355, 4
          %s370 = int_to_ptr.vmem [resolvable:$true] %s369
          %s371 = sshll.u32 %s368, 4
          %s372 = int_to_ptr.hbm [resolvable:$true] %s371
          %377 = dma.vmem_to_hbm [thread:$0]  %s370, 512, %s372, %s352, 128, 128, 8
        $region44: #{rope_pallas.1} parent=35 // pred_fallthru
          _
        // Predicated region
        $region45: #{rope_pallas.1} parent=35 // pred_check
          %p378 = pneg %p164
        $region46: #{rope_pallas.1} parent=35 // pred_check_branch
          %380 = sbr.rel (%p378) target = $region48
        $region47: #{rope_pallas.1} parent=35 // pred_region
          %s381 = smul.u32 4, %s26
          %383 = vsyncadd %s357, 0
          %s384 = smul.addr %s381, 8
          %s385 = scalar_lea.hbm %s5, %s384
          %s386 = sshll.u32 %s360, 4
          %s387 = int_to_ptr.vmem [resolvable:$true] %s386
          %s388 = sshll.u32 %s385, 4
          %s389 = int_to_ptr.hbm [resolvable:$true] %s388
          %394 = dma.vmem_to_hbm [thread:$0]  %s387, 512, %s389, %s357, 128, 128, 8
        $region48: #{rope_pallas.1} parent=35 // pred_fallthru
          _
      $region36: #{rope_pallas.1} parent=5 // pred_fallthru
        _
      %p395 = scmp.le.s32.totalorder 2, %s21
      // Predicated region
      $region49: #{rope_pallas.1} parent=5 // pred_check
        %p396 = pneg %p395
      $region50: #{rope_pallas.1} parent=5 // pred_check_branch
        %398 = sbr.rel (%p396) target = $region52
      $region51: #{rope_pallas.1} parent=5 // pred_region
        %s399 = ssub.s32 %s21, 2
        // Predicated region
        $region53: #{rope_pallas.1} parent=51 // pred_check
          %p400 = pneg %p144
        $region54: #{rope_pallas.1} parent=51 // pred_check_branch
          %402 = sbr.rel (%p400) target = $region56
        $region55: #{rope_pallas.1} parent=51 // pred_region
          %s403 = sand.u32 %s129, 1
          %s404 = scalar_lea.sflag [#allocation4], %s403
          %s405 = sand.u32 %s129, 1
          %s406 = smul.addr %s405, 32
          %s407 = scalar_lea.vmem [#allocation5], %s406
          %409 = dma.done %s404, 512
        $region56: #{rope_pallas.1} parent=51 // pred_fallthru
          _
        // Predicated region
        $region57: #{rope_pallas.1} parent=51 // pred_check
          %p410 = pneg %p170
        $region58: #{rope_pallas.1} parent=51 // pred_check_branch
          %412 = sbr.rel (%p410) target = $region60
        $region59: #{rope_pallas.1} parent=51 // pred_region
          %s413 = sand.u32 %s155, 1
          %s414 = scalar_lea.sflag [#allocation7], %s413
          %s415 = sand.u32 %s155, 1
          %s416 = smul.addr %s415, 32
          %s417 = scalar_lea.vmem [#allocation6], %s416
          %419 = dma.done %s414, 512
        $region60: #{rope_pallas.1} parent=51 // pred_fallthru
          _
      $region52: #{rope_pallas.1} parent=5 // pred_fallthru
        _
    $region6: #{rope_pallas.1} parent=1 // loop_footer
      %s25 = sadd.s32 1, %s21
    $region7: #{rope_pallas.1} parent=1 // loop_footer_branch
      %20 = sbr.rel target = $region3
    $region8: #{rope_pallas.1} parent=1 // loop_exit
      _
    %420 = vsyncpa [#allocation3], 1
    %s421 = scalar_lea.sflag [#allocation3], 1
    %422 = vsyncpa %s421, 1
    %423 = vsyncpa [#allocation4], 1
    %s424 = scalar_lea.sflag [#allocation4], 1
    %425 = vsyncpa %s424, 1
    %426 = vsyncpa [#allocation7], 1
    %s427 = scalar_lea.sflag [#allocation7], 1
    %428 = vsyncpa %s427, 1

</llo_original>
